<compile_context>
chip_gen: v7x
topology: tpu7x:2x2x1
jax: 0.10.0
libtpu: 0.0.40
codegen_flags: <defaults>
</compile_context>

<pallas_src>
import jax
import jax.numpy as jnp
from jax import lax
from jax.experimental import pallas as pl
from jax.experimental.pallas import tpu as pltpu

# ----------------------- small synthetic configuration -----------------------
B = 2                   # pointcloud batch
N_PTS = 64              # points per cloud
PAD_XYZ = 8             # xyz contraction dim zero-padded 3 -> 8 (MXU-friendlier K)
PN_HID = 128            # simplified PointNet hidden width
VIS_DIM = 128           # visual feature dim (PyTorch hardcodes 1024; scaled, lane-dense)
META_HID = VIS_DIM // 16
N_CLS = 2               # ['cat', 'book']
N_CTX = 4               # learned context tokens
CTX_LEN = 16            # context_length (stand-in for 77)
WIDTH = 128             # transformer_width / ctx_dim (stand-in for 512, lane-dense)
EMBED = 128             # embed_dim
LAYERS = 2              # transformer_layers (stand-in for 6)
HEADS = 4               # transformer_heads
HEAD_DIM = WIDTH // HEADS
VOCAB = 128             # vocab_size (stand-in for 49408)
ROWS = N_CLS * CTX_LEN  # classes folded into matmul rows
EPS = 1e-5


def _layernorm(x, w, b):
    # CLIP's LayerNorm subclass: compute in fp32.
    xf = x.astype(jnp.float32)
    mu = jnp.mean(xf, axis=-1, keepdims=True)
    var = jnp.mean((xf - mu) ** 2, axis=-1, keepdims=True)
    y = (xf - mu) * lax.rsqrt(var + EPS)
    return y * w + b


# ------------------------------ Pallas kernels -------------------------------

def pointnet_meta_kernel(pts_ref, w1_ref, b1_ref, w2_ref, b2_ref,
                         mw1_ref, mb1_ref, mw2_ref, mb2_ref, ctx_ref, o_ref):
    # TODO(synk): PointNetCls definition is not provided in the source; implemented as a
    # simplified shared point-wise MLP + per-cloud global max-pool feature encoder.
    pts = pts_ref[...].astype(jnp.bfloat16)                               # (B*N_PTS, 8)
    h = jnp.maximum(jnp.dot(pts, w1_ref[...],
                            preferred_element_type=jnp.float32) + b1_ref[...], 0.0)
    g = jnp.maximum(jnp.dot(h.astype(jnp.bfloat16), w2_ref[...],
                            preferred_element_type=jnp.float32) + b2_ref[...], 0.0)
    feat = jnp.max(g.reshape(B, N_PTS, VIS_DIM), axis=1)                  # (B, VIS_DIM)
    # pointcloud_features / pointcloud_features.norm(dim=-1, keepdim=True)  (eps-guarded)
    feat = feat * lax.rsqrt(jnp.sum(feat * feat, axis=-1, keepdims=True) + 1e-12)
    # meta_net: Linear -> ReLU -> Linear ; then ctx + bias broadcast (PromptLearner)
    m = jnp.maximum(jnp.dot(feat.astype(jnp.bfloat16), mw1_ref[...],
                            preferred_element_type=jnp.float32) + mb1_ref[...], 0.0)
    bias = jnp.dot(m.astype(jnp.bfloat16), mw2_ref[...],
                   preferred_element_type=jnp.float32) + mb2_ref[...]     # (B, WIDTH)
    o_ref[...] = ctx_ref[...][None, :, :] + bias[:, None, :]              # (B, N_CTX, WIDTH)


def text_encoder_kernel(prompts_ref, pos_ref, onehot_ref, lnf_w_ref, lnf_b_ref,
                        proj_ref, wA_ref, wB_ref, b_ref, o_ref, x_scr):
    # Fused text encoder: grid axis = layer index; activations live in VMEM scratch.
    # Packed per-layer params:
    #   wA[l]  (WIDTH, 8*WIDTH) bf16 = [w_qkv | w_out | w_fc]
    #   wB[l]  (4*WIDTH, WIDTH) bf16 = w_proj
    #   b[l]   (1, 13*WIDTH)    f32  = [b_in | b_out | b_fc | b_proj | ln1_w | ln1_b | ln2_w | ln2_b]
    W = WIDTH
    l = pl.program_id(0)

    @pl.when(l == 0)
    def _():
        # prompts + positional_embedding (batch-first layout; the PyTorch permutes are no-ops)
        x0 = prompts_ref[...] + pos_ref[...][None, :, :]                  # (N_CLS, L, W)
        x_scr[...] = x0.reshape(ROWS, W)

    wA = wA_ref[0]                                                        # (W, 8W) bf16
    b = b_ref[0]                                                          # (1, 13W) f32
    x = x_scr[...]                                                        # (ROWS, W) f32

    # --- x + attn(ln_1(x)) with causal attn_mask; classes folded into rows ---
    y = _layernorm(x, b[:, 9 * W:10 * W], b[:, 10 * W:11 * W])
    qkv = jnp.dot(y.astype(jnp.bfloat16), wA[:, :3 * W],
                  preferred_element_type=jnp.float32) + b[:, 0:3 * W]     # (ROWS, 3W)

    row = lax.broadcasted_iota(jnp.int32, (CTX_LEN, CTX_LEN), 0)
    col = lax.broadcasted_iota(jnp.int32, (CTX_LEN, CTX_LEN), 1)
    causal = (col > row)[None]                                            # (1, L, L)
    scale = HEAD_DIM ** -0.5

    attn = b[:, 3 * W:4 * W]                                              # start with b_out
    for h in range(HEADS):     # static loop; classes batched, no concatenate
        q_sl = slice(h * HEAD_DIM, (h + 1) * HEAD_DIM)
        k_sl = slice(W + h * HEAD_DIM, W + (h + 1) * HEAD_DIM)
        v_sl = slice(2 * W + h * HEAD_DIM, 2 * W + (h + 1) * HEAD_DIM)
        qh = (qkv[:, q_sl] * scale).reshape(N_CLS, CTX_LEN, HEAD_DIM)
        kh = qkv[:, k_sl].reshape(N_CLS, CTX_LEN, HEAD_DIM)
        vh = qkv[:, v_sl].reshape(N_CLS, CTX_LEN, HEAD_DIM)
        s = jnp.einsum('bqd,bkd->bqk', qh.astype(jnp.bfloat16), kh.astype(jnp.bfloat16),
                       preferred_element_type=jnp.float32)                # (N_CLS, L, L)
        s = jnp.where(causal, -jnp.inf, s)                                # additive -inf mask
        s = s - jnp.max(s, axis=-1, keepdims=True)
        p = jnp.exp(s)
        p = p * pl.reciprocal(jnp.sum(p, axis=-1, keepdims=True), approx=True)
        ctx_h = jnp.einsum('bqk,bkd->bqd', p.astype(jnp.bfloat16), vh.astype(jnp.bfloat16),
                           preferred_element_type=jnp.float32)            # (N_CLS, L, HD)
        # concat(heads) @ w_out  ==  sum_h  head_h @ w_out[h*HD:(h+1)*HD, :]
        attn = attn + jnp.dot(ctx_h.reshape(ROWS, HEAD_DIM).astype(jnp.bfloat16),
                              wA[h * HEAD_DIM:(h + 1) * HEAD_DIM, 3 * W:4 * W],
                              preferred_element_type=jnp.float32)
    x = x + attn

    # --- x + mlp(ln_2(x)), mlp = Linear -> QuickGELU -> Linear ---
    y2 = _layernorm(x, b[:, 11 * W:12 * W], b[:, 12 * W:13 * W])
    h1 = jnp.dot(y2.astype(jnp.bfloat16), wA[:, 4 * W:8 * W],
                 preferred_element_type=jnp.float32) + b[:, 4 * W:8 * W]
    h1 = h1 * jax.nn.sigmoid(1.702 * h1)                                  # QuickGELU (fp32)
    h2 = jnp.dot(h1.astype(jnp.bfloat16), wB_ref[0],
                 preferred_element_type=jnp.float32) + b[:, 8 * W:9 * W]
    x = x + h2
    x_scr[...] = x

    # --- head on the last layer: EOT gather, ln_final, @text_projection, L2-norm ---
    @pl.when(l == LAYERS - 1)
    def _():
        x3 = x.reshape(N_CLS, CTX_LEN, W)
        x_eot = jnp.sum(x3 * onehot_ref[...][:, :, None], axis=1)         # (N_CLS, W)
        yf = _layernorm(x_eot, lnf_w_ref[...], lnf_b_ref[...])
        t = jnp.dot(yf.astype(jnp.bfloat16), proj_ref[...],
                    preferred_element_type=jnp.float32)                   # (N_CLS, EMBED)
        t = t * lax.rsqrt(jnp.sum(t * t, axis=-1, keepdims=True) + 1e-12)
        o_ref[...] = t


# ------------------------------ wrappers / glue -------------------------------

def pointnet_meta(points_padded, params):
    # points_padded: (B*N_PTS, PAD_XYZ).  Single fused call: PointNet -> L2-norm ->
    # meta_net -> ctx_shifted.  All operands fit one VMEM block; no grid.
    return pl.pallas_call(
        pointnet_meta_kernel,
        out_shape=jax.ShapeDtypeStruct((B, N_CTX, WIDTH), jnp.float32),
    )(points_padded, params["pn_w1"], params["pn_b1"], params["pn_w2"], params["pn_b2"],
      params["meta_w1"], params["meta_b1"], params["meta_w2"], params["meta_b2"],
      params["ctx"])


def text_encoder(prompts, tokenized_prompts, params):
    # EOT gather expressed as a one-hot masked reduce inside the kernel.
    eot = jnp.argmax(tokenized_prompts, axis=-1)                          # (N_CLS,)
    onehot = (jnp.arange(CTX_LEN)[None, :] == eot[:, None]).astype(jnp.float32)

    return pl.pallas_call(
        text_encoder_kernel,
        out_shape=jax.ShapeDtypeStruct((N_CLS, EMBED), jnp.float32),
        grid=(LAYERS,),
        in_specs=[
            pl.BlockSpec((N_CLS, CTX_LEN, WIDTH), lambda l: (0, 0, 0)),   # prompts
            pl.BlockSpec((CTX_LEN, WIDTH), lambda l: (0, 0)),             # positional_embedding
            pl.BlockSpec((N_CLS, CTX_LEN), lambda l: (0, 0)),             # EOT one-hot
            pl.BlockSpec((1, WIDTH), lambda l: (0, 0)),                   # ln_final w
            pl.BlockSpec((1, WIDTH), lambda l: (0, 0)),                   # ln_final b
            pl.BlockSpec((WIDTH, EMBED), lambda l: (0, 0)),               # text_projection
            pl.BlockSpec((1, WIDTH, 8 * WIDTH), lambda l: (l, 0, 0)),     # wA[l] (streamed)
            pl.BlockSpec((1, 4 * WIDTH, WIDTH), lambda l: (l, 0, 0)),     # wB[l] (streamed)
            pl.BlockSpec((1, 1, 13 * WIDTH), lambda l: (l, 0, 0)),        # bias/LN slab[l]
        ],
        out_specs=pl.BlockSpec((N_CLS, EMBED), lambda l: (0, 0)),
        scratch_shapes=[pltpu.VMEM((ROWS, WIDTH), jnp.float32)],          # resident activation
        compiler_params=pltpu.CompilerParams(dimension_semantics=("arbitrary",)),
    )(prompts, params["pos_emb"], onehot, params["ln_final_w"], params["ln_final_b"],
      params["text_proj"], params["wA"], params["wB"], params["bias"])


def custom_clip_forward(pointcloud, params):
    # pointcloud: PyTorch-style (B, 3, N_PTS) -> (B*N_PTS, xyz), xyz zero-padded to 8.
    pts = jnp.transpose(pointcloud, (0, 2, 1)).reshape(B * N_PTS, 3)
    pts = jnp.pad(pts, ((0, 0), (0, PAD_XYZ - 3)))
    ctx_shifted = pointnet_meta(pts, params)                              # (B, N_CTX, WIDTH)

    # Reference loops over the batch but overwrites `text_features` each iteration and
    # returns only the LAST element's normalized text features -> compute only that one.
    ctx_i = jnp.broadcast_to(ctx_shifted[B - 1][None], (N_CLS, N_CTX, WIDTH))
    prompts = jnp.concatenate(
        [params["token_prefix"], ctx_i, params["token_suffix"]], axis=1)  # (N_CLS, CTX_LEN, WIDTH)
    return text_encoder(prompts, params["tokenized_prompts"], params)     # (N_CLS, EMBED)


# ------------------------------ parameter init --------------------------------

def init_params(key):
    ki = iter(jax.random.split(key, 12))
    p = {}
    tok_emb = 0.02 * jax.random.normal(next(ki), (VOCAB, WIDTH), jnp.float32)
    p["pos_emb"] = 0.01 * jax.random.normal(next(ki), (CTX_LEN, WIDTH), jnp.float32)
    p["text_proj"] = ((WIDTH ** -0.5) *
                      jax.random.normal(next(ki), (WIDTH, EMBED), jnp.float32)).astype(jnp.bfloat16)
    p["ln_final_w"] = jnp.ones((1, WIDTH), jnp.float32)
    p["ln_final_b"] = jnp.zeros((1, WIDTH), jnp.float32)

    # Packed transformer layers: wA = [w_qkv | w_out | w_fc], wB = w_proj,
    # bias slab = [b_in | b_out | b_fc | b_proj | ln1_w | ln1_b | ln2_w | ln2_b]
    wA, wB, bias = [], [], []
    for _ in range(LAYERS):
        lk = jax.random.split(next(ki), 4)
        w_in = (WIDTH ** -0.5) * jax.random.normal(lk[0], (WIDTH, 3 * WIDTH), jnp.float32)
        w_out = (WIDTH ** -0.5) * jax.random.normal(lk[1], (WIDTH, WIDTH), jnp.float32)
        w_fc = (WIDTH ** -0.5) * jax.random.normal(lk[2], (WIDTH, 4 * WIDTH), jnp.float32)
        w_pr = ((4 * WIDTH) ** -0.5) * jax.random.normal(lk[3], (4 * WIDTH, WIDTH), jnp.float32)
        wA.append(jnp.concatenate([w_in, w_out, w_fc], axis=1))           # (W, 8W)
        wB.append(w_pr)                                                   # (4W, W)
        bias.append(jnp.concatenate([
            jnp.zeros((3 * WIDTH,), jnp.float32),   # b_in
            jnp.zeros((WIDTH,), jnp.float32),       # b_out
            jnp.zeros((4 * WIDTH,), jnp.float32),   # b_fc
            jnp.zeros((WIDTH,), jnp.float32),       # b_proj
            jnp.ones((WIDTH,), jnp.float32),        # ln1_w
            jnp.zeros((WIDTH,), jnp.float32),       # ln1_b
            jnp.ones((WIDTH,), jnp.float32),        # ln2_w
            jnp.zeros((WIDTH,), jnp.float32),       # ln2_b
        ]).reshape(1, 13 * WIDTH))
    p["wA"] = jnp.stack(wA).astype(jnp.bfloat16)        # (LAYERS, W, 8W)
    p["wB"] = jnp.stack(wB).astype(jnp.bfloat16)        # (LAYERS, 4W, W)
    p["bias"] = jnp.stack(bias)                         # (LAYERS, 1, 13W) fp32

    # PromptLearner params
    p["ctx"] = 0.02 * jax.random.normal(next(ki), (N_CTX, WIDTH), jnp.float32)
    p["meta_w1"] = ((VIS_DIM ** -0.5) *
                    jax.random.normal(next(ki), (VIS_DIM, META_HID), jnp.float32)).astype(jnp.bfloat16)
    p["meta_b1"] = jnp.zeros((1, META_HID), jnp.float32)
    p["meta_w2"] = ((META_HID ** -0.5) *
                    jax.random.normal(next(ki), (META_HID, WIDTH), jnp.float32)).astype(jnp.bfloat16)
    p["meta_b2"] = jnp.zeros((1, WIDTH), jnp.float32)

    # simplified PointNet encoder params; xyz contraction dim zero-padded 3 -> 8
    w1 = (3 ** -0.5) * jax.random.normal(next(ki), (3, PN_HID), jnp.float32)
    p["pn_w1"] = jnp.concatenate(
        [w1, jnp.zeros((PAD_XYZ - 3, PN_HID), jnp.float32)], axis=0).astype(jnp.bfloat16)
    p["pn_b1"] = jnp.zeros((1, PN_HID), jnp.float32)
    p["pn_w2"] = ((PN_HID ** -0.5) *
                  jax.random.normal(next(ki), (PN_HID, VIS_DIM), jnp.float32)).astype(jnp.bfloat16)
    p["pn_b2"] = jnp.zeros((1, VIS_DIM), jnp.float32)

    # TODO(synk): clip.tokenize / _Tokenizer not available; synthesize deterministic
    # tokenized prompts: [SOT, 4 ctx placeholders, name tokens, '.', EOT, pad...]
    tok = []
    for c in range(N_CLS):
        ids = [1] + [5 + c] * N_CTX + [10 + c, 20 + c] + [VOCAB - 1]
        ids = ids + [0] * (CTX_LEN - len(ids))
        tok.append(ids)
    tokenized = jnp.array(tok, dtype=jnp.int32)                           # (N_CLS, CTX_LEN)
    p["tokenized_prompts"] = tokenized
    emb = jnp.take(tok_emb, tokenized, axis=0)                            # (N_CLS, CTX_LEN, WIDTH)
    p["token_prefix"] = emb[:, :1, :]                                     # SOT embedding
    p["token_suffix"] = emb[:, 1 + N_CTX:, :]                             # class tokens + EOT + pad
    return p


if __name__ == "__main__":
    key = jax.random.PRNGKey(0)
    pkey, dkey = jax.random.split(key)
    params = init_params(pkey)
    pointcloud = jax.random.normal(dkey, (B, 3, N_PTS), jnp.float32)      # PyTorch-style (B, 3, N)
    out = jax.block_until_ready(custom_clip_forward(pointcloud, params))
    assert out.shape == (N_CLS, EMBED), out.shape
    assert bool(jnp.all(jnp.isfinite(out)))
    print("KERNEL_OK")
</pallas_src>

<mosaic_0001>
module attributes {stable_mosaic.version = 11 : i64} {
  func.func @pointnet_meta_kernel(%arg0: memref<128x8xf32, #tpu.memory_space<vmem>>, %arg1: memref<8x128xbf16, #tpu.memory_space<vmem>>, %arg2: memref<1x128xf32, #tpu.memory_space<vmem>>, %arg3: memref<128x128xbf16, #tpu.memory_space<vmem>>, %arg4: memref<1x128xf32, #tpu.memory_space<vmem>>, %arg5: memref<128x8xbf16, #tpu.memory_space<vmem>>, %arg6: memref<1x8xf32, #tpu.memory_space<vmem>>, %arg7: memref<8x128xbf16, #tpu.memory_space<vmem>>, %arg8: memref<1x128xf32, #tpu.memory_space<vmem>>, %arg9: memref<4x128xf32, #tpu.memory_space<vmem>>, %arg10: memref<2x4x128xf32, #tpu.memory_space<vmem>>) attributes {dimension_semantics = [], scalar_prefetch = 0 : i64, scratch_operands = 0 : i64, tpu.core_type = #tpu.core_type<tc>} {
    %c0 = arith.constant 0 : index
    %c0_0 = arith.constant 0 : index
    %0 = vector.load %arg0[%c0, %c0_0] : memref<128x8xf32, #tpu.memory_space<vmem>>, vector<128x8xf32>
    %1 = arith.truncf %0 : vector<128x8xf32> to vector<128x8xbf16>
    %c0_1 = arith.constant 0 : index
    %c0_2 = arith.constant 0 : index
    %2 = vector.load %arg1[%c0_1, %c0_2] : memref<8x128xbf16, #tpu.memory_space<vmem>>, vector<8x128xbf16>
    %cst = arith.constant dense<0.000000e+00> : vector<128x128xf32>
    %3 = tpu.matmul %1, %2, %cst {dimension_numbers = #tpu.dot_dimension_numbers<[1], [0], [0], [1], [0, 0, 1, 1], [], []>} : vector<128x8xbf16>, vector<8x128xbf16>, vector<128x128xf32> -> vector<128x128xf32>
    %c0_3 = arith.constant 0 : index
    %c0_4 = arith.constant 0 : index
    %4 = vector.load %arg2[%c0_3, %c0_4] : memref<1x128xf32, #tpu.memory_space<vmem>>, vector<1x128xf32>
    %5 = vector.broadcast %4 : vector<1x128xf32> to vector<128x128xf32>
    %6 = arith.addf %3, %5 : vector<128x128xf32>
    %cst_5 = arith.constant 0.000000e+00 : f32
    %7 = vector.broadcast %cst_5 : f32 to vector<128x128xf32>
    %8 = arith.maximumf %6, %7 : vector<128x128xf32>
    %9 = arith.truncf %8 : vector<128x128xf32> to vector<128x128xbf16>
    %c0_6 = arith.constant 0 : index
    %c0_7 = arith.constant 0 : index
    %10 = vector.load %arg3[%c0_6, %c0_7] : memref<128x128xbf16, #tpu.memory_space<vmem>>, vector<128x128xbf16>
    %cst_8 = arith.constant dense<0.000000e+00> : vector<128x128xf32>
    %11 = tpu.matmul %9, %10, %cst_8 {dimension_numbers = #tpu.dot_dimension_numbers<[1], [0], [0], [1], [0, 0, 1, 1], [], []>} : vector<128x128xbf16>, vector<128x128xbf16>, vector<128x128xf32> -> vector<128x128xf32>
    %c0_9 = arith.constant 0 : index
    %c0_10 = arith.constant 0 : index
    %12 = vector.load %arg4[%c0_9, %c0_10] : memref<1x128xf32, #tpu.memory_space<vmem>>, vector<1x128xf32>
    %13 = vector.broadcast %12 : vector<1x128xf32> to vector<128x128xf32>
    %14 = arith.addf %11, %13 : vector<128x128xf32>
    %cst_11 = arith.constant 0.000000e+00 : f32
    %15 = vector.broadcast %cst_11 : f32 to vector<128x128xf32>
    %16 = arith.maximumf %14, %15 : vector<128x128xf32>
    %17 = vector.shape_cast %16 : vector<128x128xf32> to vector<2x64x128xf32>
    %cst_12 = arith.constant dense<0xFF800000> : vector<2x128xf32>
    %18 = vector.multi_reduction <maximumf>, %17, %cst_12 [1] : vector<2x64x128xf32> to vector<2x128xf32>
    %19 = arith.mulf %18, %18 : vector<2x128xf32>
    %cst_13 = arith.constant dense<0.000000e+00> : vector<2xf32>
    %20 = vector.multi_reduction <add>, %19, %cst_13 [1] : vector<2x128xf32> to vector<2xf32>
    %21 = vector.shape_cast %20 : vector<2xf32> to vector<2x1xf32>
    %cst_14 = arith.constant 9.99999996E-13 : f32
    %22 = vector.broadcast %cst_14 : f32 to vector<2x1xf32>
    %23 = arith.addf %21, %22 : vector<2x1xf32>
    %24 = math.rsqrt %23 : vector<2x1xf32>
    %25 = vector.broadcast %24 : vector<2x1xf32> to vector<2x128xf32>
    %26 = arith.mulf %18, %25 : vector<2x128xf32>
    %27 = arith.truncf %26 : vector<2x128xf32> to vector<2x128xbf16>
    %c0_15 = arith.constant 0 : index
    %c0_16 = arith.constant 0 : index
    %28 = vector.load %arg5[%c0_15, %c0_16] : memref<128x8xbf16, #tpu.memory_space<vmem>>, vector<128x8xbf16>
    %cst_17 = arith.constant dense<0.000000e+00> : vector<2x8xf32>
    %29 = tpu.matmul %27, %28, %cst_17 {dimension_numbers = #tpu.dot_dimension_numbers<[1], [0], [0], [1], [0, 0, 1, 1], [], []>} : vector<2x128xbf16>, vector<128x8xbf16>, vector<2x8xf32> -> vector<2x8xf32>
    %c0_18 = arith.constant 0 : index
    %c0_19 = arith.constant 0 : index
    %30 = vector.load %arg6[%c0_18, %c0_19] : memref<1x8xf32, #tpu.memory_space<vmem>>, vector<1x8xf32>
    %31 = vector.broadcast %30 : vector<1x8xf32> to vector<2x8xf32>
    %32 = arith.addf %29, %31 : vector<2x8xf32>
    %cst_20 = arith.constant 0.000000e+00 : f32
    %33 = vector.broadcast %cst_20 : f32 to vector<2x8xf32>
    %34 = arith.maximumf %32, %33 : vector<2x8xf32>
    %35 = arith.truncf %34 : vector<2x8xf32> to vector<2x8xbf16>
    %c0_21 = arith.constant 0 : index
    %c0_22 = arith.constant 0 : index
    %36 = vector.load %arg7[%c0_21, %c0_22] : memref<8x128xbf16, #tpu.memory_space<vmem>>, vector<8x128xbf16>
    %cst_23 = arith.constant dense<0.000000e+00> : vector<2x128xf32>
    %37 = tpu.matmul %35, %36, %cst_23 {dimension_numbers = #tpu.dot_dimension_numbers<[1], [0], [0], [1], [0, 0, 1, 1], [], []>} : vector<2x8xbf16>, vector<8x128xbf16>, vector<2x128xf32> -> vector<2x128xf32>
    %c0_24 = arith.constant 0 : index
    %c0_25 = arith.constant 0 : index
    %38 = vector.load %arg8[%c0_24, %c0_25] : memref<1x128xf32, #tpu.memory_space<vmem>>, vector<1x128xf32>
    %39 = vector.broadcast %38 : vector<1x128xf32> to vector<2x128xf32>
    %40 = arith.addf %37, %39 : vector<2x128xf32>
    %c0_26 = arith.constant 0 : index
    %c0_27 = arith.constant 0 : index
    %41 = vector.load %arg9[%c0_26, %c0_27] : memref<4x128xf32, #tpu.memory_space<vmem>>, vector<4x128xf32>
    %42 = vector.shape_cast %41 : vector<4x128xf32> to vector<1x4x128xf32>
    %43 = vector.shape_cast %40 : vector<2x128xf32> to vector<2x1x128xf32>
    %44 = vector.broadcast %42 : vector<1x4x128xf32> to vector<2x4x128xf32>
    %45 = vector.broadcast %43 : vector<2x1x128xf32> to vector<2x4x128xf32>
    %46 = arith.addf %44, %45 : vector<2x4x128xf32>
    %c0_28 = arith.constant 0 : index
    %c0_29 = arith.constant 0 : index
    %c0_30 = arith.constant 0 : index
    %47 = vector.load %arg10[%c0_28, %c0_29, %c0_30] : memref<2x4x128xf32, #tpu.memory_space<vmem>>, vector<2x4x128xf32>
    tpu.vector_store %arg10[%c0_28, %c0_29, %c0_30], %46 {strides = array<i32>} : memref<2x4x128xf32, #tpu.memory_space<vmem>>, vector<2x4x128xf32>,
    return
  }
}

</mosaic_0001>

<llo_original>
// kernel: tpu_custom_call.1
$region0: #{tpu_custom_call.1}
  #allocation0 [shape = 'u32[]', space=smem, size = 0x4, offset = 0x4, fixed_abs, tag = 'smem constant byte address 0x4 - core index']
  #allocation1 [shape = 'u32[144,128]{1,0:T(1,128)}', space=vmem, size = 0x12000, scoped, tag = 'internal scratch']
  %s0 = inlined_call_operand.vmem [shape: f32[128,8], index: 0, kind: input, shape index: {}]
  %s1 = inlined_call_operand.vmem [shape: bf16[8,128], index: 1, kind: input, shape index: {}]
  %s2 = inlined_call_operand.vmem [shape: f32[1,128], index: 2, kind: input, shape index: {}]
  %s3 = inlined_call_operand.vmem [shape: bf16[128,128], index: 3, kind: input, shape index: {}]
  %s4 = inlined_call_operand.vmem [shape: f32[1,128], index: 4, kind: input, shape index: {}]
  %s5 = inlined_call_operand.vmem [shape: bf16[128,8], index: 5, kind: input, shape index: {}]
  %s6 = inlined_call_operand.vmem [shape: f32[1,8], index: 6, kind: input, shape index: {}]
  %s7 = inlined_call_operand.vmem [shape: bf16[8,128], index: 7, kind: input, shape index: {}]
  %s8 = inlined_call_operand.vmem [shape: f32[1,128], index: 8, kind: input, shape index: {}]
  %s9 = inlined_call_operand.vmem [shape: f32[4,128], index: 9, kind: input, shape index: {}]
  %s10 = inlined_call_operand.hbm [shape: f32[2,4,128], index: 10, kind: output, shape index: {}]
  %s11 = sld [smem:[#allocation0]]
  $region50: #{tpu_custom_call.1} parent=0
    _
  %s13 = ssub.s32 1, %s11
  %s14 = scalar_select 0, %s13, %s11
  $region1: #{tpu_custom_call.1} parent=0
    #allocation2 [shape = 'u8[4096]{0}', space=vmem, size = 0x1000, scoped, tag = 'output window, operand 0, single buffered']
    #allocation3 [shape = 's32[1]{0}', space=sflag, size = 0x4, scoped, tag = 'scoped memory for tpu_custom_call.1']
    %15 = vsyncpa [#allocation3], 0
    // Predicated region
    $region2: #{tpu_custom_call.1} parent=1 // pred_check
      _
    $region3: #{tpu_custom_call.1} parent=1 // pred_check_branch
      %17 = sbr.rel (0) target = $region5
    $region4: #{tpu_custom_call.1} parent=1 // pred_region
      _
    $region5: #{tpu_custom_call.1} parent=1 // pred_fallthru
      _
    // Predicated region
    $region6: #{tpu_custom_call.1} parent=1 // pred_check
      _
    $region7: #{tpu_custom_call.1} parent=1 // pred_check_branch
      %19 = sbr.rel (0) target = $region9
    $region8: #{tpu_custom_call.1} parent=1 // pred_region
      _
    $region9: #{tpu_custom_call.1} parent=1 // pred_fallthru
      _
    // Predicated region
    $region10: #{tpu_custom_call.1} parent=1 // pred_check
      _
    $region11: #{tpu_custom_call.1} parent=1 // pred_check_branch
      %21 = sbr.rel (0) target = $region13
    $region12: #{tpu_custom_call.1} parent=1 // pred_region
      _
    $region13: #{tpu_custom_call.1} parent=1 // pred_fallthru
      _
    // Predicated region
    $region14: #{tpu_custom_call.1} parent=1 // pred_check
      _
    $region15: #{tpu_custom_call.1} parent=1 // pred_check_branch
      %23 = sbr.rel (0) target = $region17
    $region16: #{tpu_custom_call.1} parent=1 // pred_region
      _
    $region17: #{tpu_custom_call.1} parent=1 // pred_fallthru
      _
    // Predicated region
    $region18: #{tpu_custom_call.1} parent=1 // pred_check
      _
    $region19: #{tpu_custom_call.1} parent=1 // pred_check_branch
      %25 = sbr.rel (0) target = $region21
    $region20: #{tpu_custom_call.1} parent=1 // pred_region
      _
    $region21: #{tpu_custom_call.1} parent=1 // pred_fallthru
      _
    // Predicated region
    $region22: #{tpu_custom_call.1} parent=1 // pred_check
      _
    $region23: #{tpu_custom_call.1} parent=1 // pred_check_branch
      %27 = sbr.rel (0) target = $region25
    $region24: #{tpu_custom_call.1} parent=1 // pred_region
      _
    $region25: #{tpu_custom_call.1} parent=1 // pred_fallthru
      _
    // Predicated region
    $region26: #{tpu_custom_call.1} parent=1 // pred_check
      _
    $region27: #{tpu_custom_call.1} parent=1 // pred_check_branch
      %29 = sbr.rel (0) target = $region29
    $region28: #{tpu_custom_call.1} parent=1 // pred_region
      _
    $region29: #{tpu_custom_call.1} parent=1 // pred_fallthru
      _
    // Predicated region
    $region30: #{tpu_custom_call.1} parent=1 // pred_check
      _
    $region31: #{tpu_custom_call.1} parent=1 // pred_check_branch
      %31 = sbr.rel (0) target = $region33
    $region32: #{tpu_custom_call.1} parent=1 // pred_region
      _
    $region33: #{tpu_custom_call.1} parent=1 // pred_fallthru
      _
    // Predicated region
    $region34: #{tpu_custom_call.1} parent=1 // pred_check
      _
    $region35: #{tpu_custom_call.1} parent=1 // pred_check_branch
      %33 = sbr.rel (0) target = $region37
    $region36: #{tpu_custom_call.1} parent=1 // pred_region
      _
    $region37: #{tpu_custom_call.1} parent=1 // pred_fallthru
      _
    // Predicated region
    $region38: #{tpu_custom_call.1} parent=1 // pred_check
      _
    $region39: #{tpu_custom_call.1} parent=1 // pred_check_branch
      %35 = sbr.rel (0) target = $region41
    $region40: #{tpu_custom_call.1} parent=1 // pred_region
      _
    $region41: #{tpu_custom_call.1} parent=1 // pred_fallthru
      _
    %v37 = vld [vmem:[%s0] sm:$0xff]
    %v38 = vld [vmem:[%s0 + $0x8] sm:$0xff]
    %v39 = vld [vmem:[%s0 + $0x10] sm:$0xff]
    %v40 = vld [vmem:[%s0 + $0x18] sm:$0xff]
    %v41 = vld [vmem:[%s0 + $0x20] sm:$0xff]
    %v42 = vld [vmem:[%s0 + $0x28] sm:$0xff]
    %v43 = vld [vmem:[%s0 + $0x30] sm:$0xff]
    %v44 = vld [vmem:[%s0 + $0x38] sm:$0xff]
    %v45 = vld [vmem:[%s0 + $0x40] sm:$0xff]
    %v46 = vld [vmem:[%s0 + $0x48] sm:$0xff]
    %v47 = vld [vmem:[%s0 + $0x50] sm:$0xff]
    %v48 = vld [vmem:[%s0 + $0x58] sm:$0xff]
    %v49 = vld [vmem:[%s0 + $0x60] sm:$0xff]
    %v50 = vld [vmem:[%s0 + $0x68] sm:$0xff]
    %v51 = vld [vmem:[%s0 + $0x70] sm:$0xff]
    %v52 = vld [vmem:[%s0 + $0x78] sm:$0xff]
    %v53 = vpack.c.bf16 %v38, %v37
    %v54 = vpack.c.bf16 %v40, %v39
    %v55 = vpack.c.bf16 %v42, %v41
    %v56 = vpack.c.bf16 %v44, %v43
    %v57 = vpack.c.bf16 %v46, %v45
    %v58 = vpack.c.bf16 %v48, %v47
    %v59 = vpack.c.bf16 %v50, %v49
    %v60 = vpack.c.bf16 %v52, %v51
    %v61 = vld [vmem:[%s1] sm:$0xf]
    %v62 = vld [vmem:[%s2] sm:$0x1]
    %v64 = vlaneseq
    %v65 = vshrl.u32 %v64, 7
    %v66 = vsub.s32 0, %v65
    %v67 = vrot.slane %v62, %v66
    %vm69 = vcmask 64512
    %v71 = vsel %vm69, %v53, 0
    %v74 = vsel %vm69, %v54, 0
    %v77 = vsel %vm69, %v55, 0
    %v80 = vsel %vm69, %v56, 0
    %v83 = vsel %vm69, %v57, 0
    %v86 = vsel %vm69, %v58, 0
    %v89 = vsel %vm69, %v59, 0
    %v92 = vsel %vm69, %v60, 0
    %vm94 = vcmask 1043456
    %v96 = vsel %vm94, %v61, 0
    %98 = vmatprep.subr.bf16.mxu0 0
    %99 = vmatpush1.bf16.msra.mxu0 %v96
    %100 = vmatprep.subr.bf16.mxu0 0
    %101 = vmatpush1.bf16.msra.mxu0 0
    %102 = vmatprep.subr.bf16.mxu0 0
    %103 = vmatpush1.bf16.msra.mxu0 0
    %104 = vmatprep.subr.bf16.mxu0 0
    %105 = vmatpush1.bf16.msra.mxu0 0
    %106 = vmatprep.subr.bf16.mxu0 0
    %107 = vmatpush1.bf16.msra.mxu0 0
    %108 = vmatprep.subr.bf16.mxu0 0
    %109 = vmatpush1.bf16.msra.mxu0 0
    %110 = vmatprep.subr.bf16.mxu0 0
    %111 = vmatpush1.bf16.msra.mxu0 0
    %112 = vmatprep.subr.bf16.mxu0 0
    %113 = vmatpush1.bf16.msra.mxu0 0
    %114 = vmatprep.subr.bf16.mxu0 0
    %115 = vmatpush1.bf16.msra.mxu0 0
    %116 = vmatprep.subr.bf16.mxu0 0
    %117 = vmatpush1.bf16.msra.mxu0 0
    %118 = vmatprep.subr.bf16.mxu0 0
    %119 = vmatpush1.bf16.msra.mxu0 0
    %120 = vmatprep.subr.bf16.mxu0 0
    %121 = vmatpush1.bf16.msra.mxu0 0
    %122 = vmatprep.subr.bf16.mxu0 0
    %123 = vmatpush1.bf16.msra.mxu0 0
    %124 = vmatprep.subr.bf16.mxu0 0
    %125 = vmatpush1.bf16.msra.mxu0 0
    %126 = vmatprep.subr.bf16.mxu0 0
    %127 = vmatpush1.bf16.msra.mxu0 0
    %128 = vmatprep.subr.bf16.mxu0 0
    %129 = vmatpush1.bf16.msra.mxu0 0
    %130 = vmatprep.mubr.bf16.mxu0 0
    %131 = vmatmul.mubr.bf16.gmra.mrb[0].mxu0 %v71
    %v132 = vpop.f32.mrb[0].mxu0
    %v133 = vadd.f32 %v67, %v132
    %v134 = vpop.f32.mrb[0].mxu0
    %v135 = vpop.f32.mrb[0].mxu0
    %v136 = vadd.f32 %v67, %v135
    %v137 = vpop.f32.mrb[0].mxu0
    %138 = vmatprep.mubr.bf16.mxu0 0
    %139 = vmatmul.mubr.bf16.gmra.mrb[0].mxu0 %v74
    %v140 = vpop.f32.mrb[0].mxu0
    %v141 = vadd.f32 %v67, %v140
    %v142 = vpop.f32.mrb[0].mxu0
    %v143 = vpop.f32.mrb[0].mxu0
    %v144 = vadd.f32 %v67, %v143
    %v145 = vpop.f32.mrb[0].mxu0
    %146 = vmatprep.mubr.bf16.mxu0 0
    %147 = vmatmul.mubr.bf16.gmra.mrb[0].mxu0 %v77
    %v148 = vpop.f32.mrb[0].mxu0
    %v149 = vadd.f32 %v67, %v148
    %v150 = vpop.f32.mrb[0].mxu0
    %v151 = vpop.f32.mrb[0].mxu0
    %v152 = vadd.f32 %v67, %v151
    %v153 = vpop.f32.mrb[0].mxu0
    %154 = vmatprep.mubr.bf16.mxu0 0
    %155 = vmatmul.mubr.bf16.gmra.mrb[0].mxu0 %v80
    %v156 = vpop.f32.mrb[0].mxu0
    %v157 = vadd.f32 %v67, %v156
    %v158 = vpop.f32.mrb[0].mxu0
    %v159 = vpop.f32.mrb[0].mxu0
    %v160 = vadd.f32 %v67, %v159
    %v161 = vpop.f32.mrb[0].mxu0
    %162 = vmatprep.mubr.bf16.mxu0 0
    %163 = vmatmul.mubr.bf16.gmra.mrb[0].mxu0 %v83
    %v164 = vpop.f32.mrb[0].mxu0
    %v165 = vadd.f32 %v67, %v164
    %v166 = vpop.f32.mrb[0].mxu0
    %v167 = vpop.f32.mrb[0].mxu0
    %v168 = vadd.f32 %v67, %v167
    %v169 = vpop.f32.mrb[0].mxu0
    %170 = vmatprep.mubr.bf16.mxu0 0
    %171 = vmatmul.mubr.bf16.gmra.mrb[0].mxu0 %v86
    %v172 = vpop.f32.mrb[0].mxu0
    %v173 = vadd.f32 %v67, %v172
    %v174 = vpop.f32.mrb[0].mxu0
    %v175 = vpop.f32.mrb[0].mxu0
    %v176 = vadd.f32 %v67, %v175
    %v177 = vpop.f32.mrb[0].mxu0
    %178 = vmatprep.mubr.bf16.mxu0 0
    %179 = vmatmul.mubr.bf16.gmra.mrb[0].mxu0 %v89
    %v180 = vpop.f32.mrb[0].mxu0
    %v181 = vadd.f32 %v67, %v180
    %v182 = vpop.f32.mrb[0].mxu0
    %v183 = vpop.f32.mrb[0].mxu0
    %v184 = vadd.f32 %v67, %v183
    %v185 = vpop.f32.mrb[0].mxu0
    %186 = vmatprep.mubr.bf16.mxu0 0
    %187 = vmatmul.mubr.bf16.gmra.mrb[0].mxu0 %v92
    %v188 = vpop.f32.mrb[0].mxu0
    %v189 = vadd.f32 %v67, %v188
    %v190 = vpop.f32.mrb[0].mxu0
    %v191 = vpop.f32.mrb[0].mxu0
    %v192 = vadd.f32 %v67, %v191
    %v193 = vpop.f32.mrb[0].mxu0
    %194 = vdwg.mxu0
    %v195 = vmax.f32 %v133, 0.0
    %v196 = vmax.f32 %v136, 0.0
    %v197 = vmax.f32 %v141, 0.0
    %v198 = vmax.f32 %v144, 0.0
    %v199 = vmax.f32 %v149, 0.0
    %v200 = vmax.f32 %v152, 0.0
    %v201 = vmax.f32 %v157, 0.0
    %v202 = vmax.f32 %v160, 0.0
    %v203 = vmax.f32 %v165, 0.0
    %v204 = vmax.f32 %v168, 0.0
    %v205 = vmax.f32 %v173, 0.0
    %v206 = vmax.f32 %v176, 0.0
    %v207 = vmax.f32 %v181, 0.0
    %v208 = vmax.f32 %v184, 0.0
    %v209 = vmax.f32 %v189, 0.0
    %v210 = vmax.f32 %v192, 0.0
    %v211 = vpack.c.bf16 %v196, %v195
    %v212 = vpack.c.bf16 %v198, %v197
    %v213 = vpack.c.bf16 %v200, %v199
    %v214 = vpack.c.bf16 %v202, %v201
    %v215 = vpack.c.bf16 %v204, %v203
    %v216 = vpack.c.bf16 %v206, %v205
    %v217 = vpack.c.bf16 %v208, %v207
    %v218 = vpack.c.bf16 %v210, %v209
    %v219 = vld [vmem:[%s3] sm:$0xf]
    %v220 = vld [vmem:[%s3 + $0x4] sm:$0xf]
    %v221 = vld [vmem:[%s3 + $0x8] sm:$0xf]
    %v222 = vld [vmem:[%s3 + $0xc] sm:$0xf]
    %v223 = vld [vmem:[%s3 + $0x10] sm:$0xf]
    %v224 = vld [vmem:[%s3 + $0x14] sm:$0xf]
    %v225 = vld [vmem:[%s3 + $0x18] sm:$0xf]
    %v226 = vld [vmem:[%s3 + $0x1c] sm:$0xf]
    %v227 = vld [vmem:[%s3 + $0x20] sm:$0xf]
    %v228 = vld [vmem:[%s3 + $0x24] sm:$0xf]
    %v229 = vld [vmem:[%s3 + $0x28] sm:$0xf]
    %v230 = vld [vmem:[%s3 + $0x2c] sm:$0xf]
    %v231 = vld [vmem:[%s3 + $0x30] sm:$0xf]
    %v232 = vld [vmem:[%s3 + $0x34] sm:$0xf]
    %v233 = vld [vmem:[%s3 + $0x38] sm:$0xf]
    %v234 = vld [vmem:[%s3 + $0x3c] sm:$0xf]
    %v235 = vld [vmem:[%s4] sm:$0x1]
    %v237 = vlaneseq
    %v238 = vshrl.u32 %v237, 7
    %v239 = vsub.s32 0, %v238
    %v240 = vrot.slane %v235, %v239
    %v258 = vunpack.c.l.b16 %v219
    %v259 = vunpack.c.l.b16 %v220
    %v260 = vunpack.c.l.b16 %v221
    %v261 = vunpack.c.l.b16 %v222
    %v262 = vunpack.c.l.b16 %v223
    %v263 = vunpack.c.l.b16 %v224
    %v264 = vunpack.c.l.b16 %v225
    %v265 = vunpack.c.l.b16 %v226
    %v266 = vunpack.c.l.b16 %v227
    %v267 = vunpack.c.l.b16 %v228
    %v268 = vunpack.c.l.b16 %v229
    %v269 = vunpack.c.l.b16 %v230
    %v270 = vunpack.c.l.b16 %v231
    %v271 = vunpack.c.l.b16 %v232
    %v272 = vunpack.c.l.b16 %v233
    %v273 = vunpack.c.l.b16 %v234
    %v274 = vpack.c.b16 %v259, %v258
    %v275 = vpack.c.b16 %v261, %v260
    %v276 = vpack.c.b16 %v263, %v262
    %v277 = vpack.c.b16 %v265, %v264
    %v278 = vpack.c.b16 %v267, %v266
    %v279 = vpack.c.b16 %v269, %v268
    %v280 = vpack.c.b16 %v271, %v270
    %v281 = vpack.c.b16 %v273, %v272
    %290 = vmatprep.subr.bf16.mxu0 0
    %291 = vmatpush1.bf16.msra.mxu0 %v274
    %292 = vmatprep.subr.bf16.mxu0 0
    %293 = vmatpush1.bf16.msra.mxu0 %v275
    %294 = vmatprep.subr.bf16.mxu0 0
    %295 = vmatpush1.bf16.msra.mxu0 %v276
    %296 = vmatprep.subr.bf16.mxu0 0
    %297 = vmatpush1.bf16.msra.mxu0 %v277
    %298 = vmatprep.subr.bf16.mxu0 0
    %299 = vmatpush1.bf16.msra.mxu0 %v278
    %300 = vmatprep.subr.bf16.mxu0 0
    %301 = vmatpush1.bf16.msra.mxu0 %v279
    %302 = vmatprep.subr.bf16.mxu0 0
    %303 = vmatpush1.bf16.msra.mxu0 %v280
    %304 = vmatprep.subr.bf16.mxu0 0
    %305 = vmatpush1.bf16.msra.mxu0 %v281
    %306 = vmatprep.subr.bf16.mxu0 0
    %307 = vmatpush1.bf16.msra.mxu0 0
    %308 = vmatprep.subr.bf16.mxu0 0
    %309 = vmatpush1.bf16.msra.mxu0 0
    %310 = vmatprep.subr.bf16.mxu0 0
    %311 = vmatpush1.bf16.msra.mxu0 0
    %312 = vmatprep.subr.bf16.mxu0 0
    %313 = vmatpush1.bf16.msra.mxu0 0
    %314 = vmatprep.subr.bf16.mxu0 0
    %315 = vmatpush1.bf16.msra.mxu0 0
    %316 = vmatprep.subr.bf16.mxu0 0
    %317 = vmatpush1.bf16.msra.mxu0 0
    %318 = vmatprep.subr.bf16.mxu0 0
    %319 = vmatpush1.bf16.msra.mxu0 0
    %320 = vmatprep.subr.bf16.mxu0 0
    %321 = vmatpush1.bf16.msra.mxu0 0
    %322 = vmatprep.mubr.bf16.mxu0 0
    %323 = vmatmul.mubr.bf16.gmra.mrb[0].mxu0 %v211
    %v324 = vpop.f32.mrb[0].mxu0
    %v325 = vadd.f32 %v240, %v324
    %v326 = vpop.f32.mrb[0].mxu0
    %v327 = vpop.f32.mrb[0].mxu0
    %v328 = vadd.f32 %v240, %v327
    %v329 = vpop.f32.mrb[0].mxu0
    %330 = vmatprep.mubr.bf16.mxu0 0
    %331 = vmatmul.mubr.bf16.gmra.mrb[0].mxu0 %v212
    %v332 = vpop.f32.mrb[0].mxu0
    %v333 = vadd.f32 %v240, %v332
    %v334 = vpop.f32.mrb[0].mxu0
    %v335 = vpop.f32.mrb[0].mxu0
    %v336 = vadd.f32 %v240, %v335
    %v337 = vpop.f32.mrb[0].mxu0
    %338 = vmatprep.mubr.bf16.mxu0 0
    %339 = vmatmul.mubr.bf16.gmra.mrb[0].mxu0 %v213
    %v340 = vpop.f32.mrb[0].mxu0
    %v341 = vadd.f32 %v240, %v340
    %v342 = vpop.f32.mrb[0].mxu0
    %v343 = vpop.f32.mrb[0].mxu0
    %v344 = vadd.f32 %v240, %v343
    %v345 = vpop.f32.mrb[0].mxu0
    %346 = vmatprep.mubr.bf16.mxu0 0
    %347 = vmatmul.mubr.bf16.gmra.mrb[0].mxu0 %v214
    %v348 = vpop.f32.mrb[0].mxu0
    %v349 = vadd.f32 %v240, %v348
    %v350 = vpop.f32.mrb[0].mxu0
    %v351 = vpop.f32.mrb[0].mxu0
    %v352 = vadd.f32 %v240, %v351
    %v353 = vpop.f32.mrb[0].mxu0
    %354 = vmatprep.mubr.bf16.mxu0 0
    %355 = vmatmul.mubr.bf16.gmra.mrb[0].mxu0 %v215
    %v356 = vpop.f32.mrb[0].mxu0
    %v357 = vadd.f32 %v240, %v356
    %v358 = vpop.f32.mrb[0].mxu0
    %v359 = vpop.f32.mrb[0].mxu0
    %v360 = vadd.f32 %v240, %v359
    %v361 = vpop.f32.mrb[0].mxu0
    %362 = vmatprep.mubr.bf16.mxu0 0
    %363 = vmatmul.mubr.bf16.gmra.mrb[0].mxu0 %v216
    %v364 = vpop.f32.mrb[0].mxu0
    %v365 = vadd.f32 %v240, %v364
    %v366 = vpop.f32.mrb[0].mxu0
    %v367 = vpop.f32.mrb[0].mxu0
    %v368 = vadd.f32 %v240, %v367
    %v369 = vpop.f32.mrb[0].mxu0
    %370 = vmatprep.mubr.bf16.mxu0 0
    %371 = vmatmul.mubr.bf16.gmra.mrb[0].mxu0 %v217
    %v372 = vpop.f32.mrb[0].mxu0
    %v373 = vadd.f32 %v240, %v372
    %v374 = vpop.f32.mrb[0].mxu0
    %v375 = vpop.f32.mrb[0].mxu0
    %v376 = vadd.f32 %v240, %v375
    %v377 = vpop.f32.mrb[0].mxu0
    %378 = vmatprep.mubr.bf16.mxu0 0
    %379 = vmatmul.mubr.bf16.gmra.mrb[0].mxu0 %v218
    %v380 = vpop.f32.mrb[0].mxu0
    %v381 = vadd.f32 %v240, %v380
    %v382 = vpop.f32.mrb[0].mxu0
    %v383 = vpop.f32.mrb[0].mxu0
    %v384 = vadd.f32 %v240, %v383
    %v385 = vpop.f32.mrb[0].mxu0
    %386 = vdwg.mxu0
    %v387 = vmax.f32 %v325, 0.0
    %v388 = vmax.f32 %v328, 0.0
    %v389 = vmax.f32 %v333, 0.0
    %v390 = vmax.f32 %v336, 0.0
    %v391 = vmax.f32 %v341, 0.0
    %v392 = vmax.f32 %v344, 0.0
    %v393 = vmax.f32 %v349, 0.0
    %v394 = vmax.f32 %v352, 0.0
    %v395 = vmax.f32 %v357, 0.0
    %v396 = vmax.f32 %v360, 0.0
    %v397 = vmax.f32 %v365, 0.0
    %v398 = vmax.f32 %v368, 0.0
    %v399 = vmax.f32 %v373, 0.0
    %v400 = vmax.f32 %v376, 0.0
    %v401 = vmax.f32 %v381, 0.0
    %v402 = vmax.f32 %v384, 0.0
    %v403 = vmax.f32 %v387, %v389
    %v404 = vmax.f32 %v388, %v390
    %v405 = vmax.f32 %v403, %v391
    %v406 = vmax.f32 %v404, %v392
    %v407 = vmax.f32 %v405, %v393
    %v408 = vmax.f32 %v406, %v394
    %v409 = vmax.f32 %v407, %v408
    %v410 = vrot.slane %v409, 4
    %v411 = vmax.f32 %v409, %v410
    %v412 = vrot.slane %v411, 2
    %v413 = vmax.f32 %v411, %v412
    %v414 = vrot.slane %v413, 1
    %v415 = vmax.f32 %v413, %v414
    %v416 = vmax.f32 %v395, %v397
    %v417 = vmax.f32 %v396, %v398
    %v418 = vmax.f32 %v416, %v399
    %v419 = vmax.f32 %v417, %v400
    %v420 = vmax.f32 %v418, %v401
    %v421 = vmax.f32 %v419, %v402
    %v422 = vmax.f32 %v420, %v421
    %v423 = vrot.slane %v422, 4
    %v424 = vmax.f32 %v422, %v423
    %v425 = vrot.slane %v424, 2
    %v426 = vmax.f32 %v424, %v425
    %v427 = vrot.slane %v426, 1
    %v428 = vmax.f32 %v426, %v427
    %v429 = vmul.f32 %v415, %v415
    %v430 = vmul.f32 %v428, %v428
    %vm433 = vcmask 1041409
    %v434 = vsel %vm433, %v430, %v429
    %vm436 = vcmask 1041408
    %v437 = vsel %vm436, %v434, 0.0
    %438 = vadd.xlane.f32.xlu0 %v437
    %v439 = vpop.xlane.xlu0 %438
    %v440 = vadd.f32 %v439, 1e-12
    %v441 = vrsqrt.pop %v440
    %v443 = vrot.slane %v441, 1
    %v446 = vmul.f32 %v415, %v441
    %v447 = vmul.f32 %v428, %v443
    %v448 = vpack.c.bf16 %v446, %v446
    %v449 = vpack.c.bf16 %v447, %v447
    %v450 = vld [vmem:[%s5] sm:$0xf]
    %v451 = vld [vmem:[%s5 + $0x4] sm:$0xf]
    %v452 = vld [vmem:[%s5 + $0x8] sm:$0xf]
    %v453 = vld [vmem:[%s5 + $0xc] sm:$0xf]
    %v454 = vld [vmem:[%s5 + $0x10] sm:$0xf]
    %v455 = vld [vmem:[%s5 + $0x14] sm:$0xf]
    %v456 = vld [vmem:[%s5 + $0x18] sm:$0xf]
    %v457 = vld [vmem:[%s5 + $0x1c] sm:$0xf]
    %v458 = vld [vmem:[%s5 + $0x20] sm:$0xf]
    %v459 = vld [vmem:[%s5 + $0x24] sm:$0xf]
    %v460 = vld [vmem:[%s5 + $0x28] sm:$0xf]
    %v461 = vld [vmem:[%s5 + $0x2c] sm:$0xf]
    %v462 = vld [vmem:[%s5 + $0x30] sm:$0xf]
    %v463 = vld [vmem:[%s5 + $0x34] sm:$0xf]
    %v464 = vld [vmem:[%s5 + $0x38] sm:$0xf]
    %v465 = vld [vmem:[%s5 + $0x3c] sm:$0xf]
    %v466 = vld [vmem:[%s6] sm:$0x1]
    %v468 = vlaneseq
    %v469 = vshrl.u32 %v468, 7
    %v470 = vsub.s32 0, %v469
    %v471 = vrot.slane %v466, %v470
    %v475 = vunpack.c.l.b16 %v448
    %v476 = vunpack.c.l.b16 %v449
    %v477 = vrot.slane %v476, 7
    %v478 = vsel %vm433, %v477, %v475
    %v479 = vpack.c.b16 %v478, %v478
    %v497 = vunpack.c.l.b16 %v450
    %v498 = vunpack.c.l.b16 %v451
    %v499 = vunpack.c.l.b16 %v452
    %v500 = vunpack.c.l.b16 %v453
    %v501 = vunpack.c.l.b16 %v454
    %v502 = vunpack.c.l.b16 %v455
    %v503 = vunpack.c.l.b16 %v456
    %v504 = vunpack.c.l.b16 %v457
    %v505 = vunpack.c.l.b16 %v458
    %v506 = vunpack.c.l.b16 %v459
    %v507 = vunpack.c.l.b16 %v460
    %v508 = vunpack.c.l.b16 %v461
    %v509 = vunpack.c.l.b16 %v462
    %v510 = vunpack.c.l.b16 %v463
    %v511 = vunpack.c.l.b16 %v464
    %v512 = vunpack.c.l.b16 %v465
    %v513 = vpack.c.b16 %v498, %v497
    %v514 = vpack.c.b16 %v500, %v499
    %v515 = vpack.c.b16 %v502, %v501
    %v516 = vpack.c.b16 %v504, %v503
    %v517 = vpack.c.b16 %v506, %v505
    %v518 = vpack.c.b16 %v508, %v507
    %v519 = vpack.c.b16 %v510, %v509
    %v520 = vpack.c.b16 %v512, %v511
    %529 = vmatprep.subr.bf16.mxu0 0
    %530 = vmatpush1.bf16.msra.mxu0 %v513
    %531 = vmatprep.subr.bf16.mxu0 0
    %532 = vmatpush1.bf16.msra.mxu0 %v514
    %533 = vmatprep.subr.bf16.mxu0 0
    %534 = vmatpush1.bf16.msra.mxu0 %v515
    %535 = vmatprep.subr.bf16.mxu0 0
    %536 = vmatpush1.bf16.msra.mxu0 %v516
    %537 = vmatprep.subr.bf16.mxu0 0
    %538 = vmatpush1.bf16.msra.mxu0 %v517
    %539 = vmatprep.subr.bf16.mxu0 0
    %540 = vmatpush1.bf16.msra.mxu0 %v518
    %541 = vmatprep.subr.bf16.mxu0 0
    %542 = vmatpush1.bf16.msra.mxu0 %v519
    %543 = vmatprep.subr.bf16.mxu0 0
    %544 = vmatpush1.bf16.msra.mxu0 %v520
    %545 = vmatprep.subr.bf16.mxu0 0
    %546 = vmatpush1.bf16.msra.mxu0 0
    %547 = vmatprep.subr.bf16.mxu0 0
    %548 = vmatpush1.bf16.msra.mxu0 0
    %549 = vmatprep.subr.bf16.mxu0 0
    %550 = vmatpush1.bf16.msra.mxu0 0
    %551 = vmatprep.subr.bf16.mxu0 0
    %552 = vmatpush1.bf16.msra.mxu0 0
    %553 = vmatprep.subr.bf16.mxu0 0
    %554 = vmatpush1.bf16.msra.mxu0 0
    %555 = vmatprep.subr.bf16.mxu0 0
    %556 = vmatpush1.bf16.msra.mxu0 0
    %557 = vmatprep.subr.bf16.mxu0 0
    %558 = vmatpush1.bf16.msra.mxu0 0
    %559 = vmatprep.subr.bf16.mxu0 0
    %560 = vmatpush1.bf16.msra.mxu0 0
    %561 = vmatprep.mubr.bf16.mxu0 0
    %562 = vmatmul.mubr.bf16.gmra.mrb[0].mxu0 %v479
    %v563 = vpop.f32.mrb[0].mxu0
    %v564 = vadd.f32 %v471, %v563
    %v565 = vpop.f32.mrb[0].mxu0
    %v566 = vpop.f32.mrb[0].mxu0
    %v567 = vpop.f32.mrb[0].mxu0
    %568 = vdwg.mxu0
    %v569 = vmax.f32 %v564, 0.0
    %v570 = vpack.c.bf16 %v569, %v569
    %v571 = vld [vmem:[%s7] sm:$0xf]
    %v572 = vld [vmem:[%s8] sm:$0x1]
    %v574 = vlaneseq
    %v575 = vshrl.u32 %v574, 7
    %v576 = vsub.s32 0, %v575
    %v577 = vrot.slane %v572, %v576
    %v580 = vsel %vm69, %v570, 0
    %v583 = vsel %vm94, %v571, 0
    %585 = vmatprep.subr.bf16.mxu0 0
    %586 = vmatpush1.bf16.msra.mxu0 %v583
    %587 = vmatprep.subr.bf16.mxu0 0
    %588 = vmatpush1.bf16.msra.mxu0 0
    %589 = vmatprep.subr.bf16.mxu0 0
    %590 = vmatpush1.bf16.msra.mxu0 0
    %591 = vmatprep.subr.bf16.mxu0 0
    %592 = vmatpush1.bf16.msra.mxu0 0
    %593 = vmatprep.subr.bf16.mxu0 0
    %594 = vmatpush1.bf16.msra.mxu0 0
    %595 = vmatprep.subr.bf16.mxu0 0
    %596 = vmatpush1.bf16.msra.mxu0 0
    %597 = vmatprep.subr.bf16.mxu0 0
    %598 = vmatpush1.bf16.msra.mxu0 0
    %599 = vmatprep.subr.bf16.mxu0 0
    %600 = vmatpush1.bf16.msra.mxu0 0
    %601 = vmatprep.subr.bf16.mxu0 0
    %602 = vmatpush1.bf16.msra.mxu0 0
    %603 = vmatprep.subr.bf16.mxu0 0
    %604 = vmatpush1.bf16.msra.mxu0 0
    %605 = vmatprep.subr.bf16.mxu0 0
    %606 = vmatpush1.bf16.msra.mxu0 0
    %607 = vmatprep.subr.bf16.mxu0 0
    %608 = vmatpush1.bf16.msra.mxu0 0
    %609 = vmatprep.subr.bf16.mxu0 0
    %610 = vmatpush1.bf16.msra.mxu0 0
    %611 = vmatprep.subr.bf16.mxu0 0
    %612 = vmatpush1.bf16.msra.mxu0 0
    %613 = vmatprep.subr.bf16.mxu0 0
    %614 = vmatpush1.bf16.msra.mxu0 0
    %615 = vmatprep.subr.bf16.mxu0 0
    %616 = vmatpush1.bf16.msra.mxu0 0
    %617 = vmatprep.mubr.bf16.mxu0 0
    %618 = vmatmul.mubr.bf16.gmra.mrb[0].mxu0 %v580
    %v619 = vpop.f32.mrb[0].mxu0
    %v620 = vadd.f32 %v577, %v619
    %v621 = vpop.f32.mrb[0].mxu0
    %v622 = vpop.f32.mrb[0].mxu0
    %v623 = vpop.f32.mrb[0].mxu0
    %624 = vdwg.mxu0
    %v625 = vld [vmem:[%s9] sm:$0xf]
    %v628 = vunpack.c.l.s4 1966171168
    %v629 = vunpack.c.0.s8 %v628
    %v630 = vlaneseq
    %v631 = vshrl.u32 %v630, 7
    %v632 = vsub.s32 %v629, %v631
    %v633 = vrot.slane %v620, %v632
    %v634 = vcombine.high %v633, %v633
    %v636 = vunpack.c.l.s4 1966171168
    %v637 = vunpack.c.0.s8 %v636
    %v638 = vlaneseq
    %v639 = vshrl.u32 %v638, 7
    %v640 = vsub.s32 %v637, %v639
    %v641 = vrot.slane %v633, %v640
    %v643 = vunpack.c.l.s4 1966171168
    %v644 = vunpack.c.0.s8 %v643
    %v645 = vlaneseq
    %v646 = vshrl.u32 %v645, 7
    %v647 = vsub.s32 %v644, %v646
    %v648 = vrot.slane %v634, %v647
    %v649 = vlaneseq
    %v650 = vshrl.u32 %v649, 7
    %v651 = vsub.s32 0, %v650
    %v652 = vrot.slane %v641, %v651
    %v653 = vlaneseq
    %v654 = vshrl.u32 %v653, 7
    %v655 = vsub.s32 0, %v654
    %v656 = vrot.slane %v648, %v655
    %v659 = vadd.f32 %v625, %v652
    %v660 = vadd.f32 %v625, %v656
    %661 = vst [vmem:[#allocation2] sm:$0xf] %v659
    %662 = vst [vmem:[#allocation2 + $0x4] sm:$0xf] %v660
    // Predicated region
    $region42: #{tpu_custom_call.1} parent=1 // pred_check
      _
    $region43: #{tpu_custom_call.1} parent=1 // pred_check_branch
      %664 = sbr.rel (0) target = $region45
    $region44: #{tpu_custom_call.1} parent=1 // pred_region
      %s666 = ssub.s32 128, 128
      %667 = vsyncadd [#allocation3], %s666
      %s668 = sshll.u32 [#allocation2], 4
      %s669 = int_to_ptr.vmem [resolvable:$true] %s668
      %674 = dma.vmem_to_hbm [thread:$0]  %s669, 128, %s10, [#allocation3], 64, 64, 4
    $region45: #{tpu_custom_call.1} parent=1 // pred_fallthru
      _
    // Predicated region
    $region46: #{tpu_custom_call.1} parent=1 // pred_check
      _
    $region47: #{tpu_custom_call.1} parent=1 // pred_check_branch
      %676 = sbr.rel (0) target = $region49
    $region48: #{tpu_custom_call.1} parent=1 // pred_region
      %677 = dma.done [#allocation3], 128
    $region49: #{tpu_custom_call.1} parent=1 // pred_fallthru
      _
    %678 = vsyncpa [#allocation3], 1

</llo_original>
